<compile_context>
chip_gen: v5e
topology: v5e:2x2
jax: 0.10.0
libtpu: 0.0.40
codegen_flags: <defaults>
</compile_context>

<pallas_src>
import functools

import jax
import jax.numpy as jnp
import numpy as np
from jax.experimental import pallas as pl
from jax.experimental.pallas import tpu as pltpu


def _round_up(x, m):
    return ((x + m - 1) // m) * m


# --------------------------------------------------------------------------
# Kernel: accumulate per-row sums of sigmoid(p)*t, sigmoid(p), t over HW tiles
# --------------------------------------------------------------------------
def _dice_sums_kernel(pred_ref, targ_ref, pt_ref, ps_ref, ts_ref,
                      *, hw, tk, mask_cols):
    j = pl.program_id(1)

    @pl.when(j == 0)
    def _init():
        pt_ref[...] = jnp.zeros_like(pt_ref)
        ps_ref[...] = jnp.zeros_like(ps_ref)
        ts_ref[...] = jnp.zeros_like(ts_ref)

    x = pred_ref[...].astype(jnp.float32)
    t = targ_ref[...].astype(jnp.float32)
    # sigmoid(x) == 0.5 * (tanh(0.5 * x) + 1): single EUP transcendental/elem.
    p = 0.5 * (jnp.tanh(0.5 * x) + 1.0)

    if mask_cols:  # last column tile sticks out past HW: zero the overhang
        col = jax.lax.broadcasted_iota(jnp.int32, x.shape, 1) + j * tk
        keep = col < hw
        p = jnp.where(keep, p, 0.0)
        t = jnp.where(keep, t, 0.0)

    pt_ref[...] += jnp.sum(p * t, axis=1, keepdims=True)
    ps_ref[...] += jnp.sum(p, axis=1, keepdims=True)
    ts_ref[...] += jnp.sum(t, axis=1, keepdims=True)


_TARGET_TILE_ELEMS = 512 * 1024  # ~2 MiB f32 per input tile (roofline sweet spot)


def _choose_tiles(n_rows, hw):
    """Pick (tn, tk) so an input tile is ~_TARGET_TILE_ELEMS elements."""
    if 8 * hw <= _TARGET_TILE_ELEMS:
        tk = hw                                          # full row per tile (always legal)
    else:
        tk = (_TARGET_TILE_ELEMS // 8) // 128 * 128      # 128-lane-aligned column split
    tn = max(8, _round_up(_TARGET_TILE_ELEMS // tk, 8))
    if n_rows >= 16:
        # keep >= 2 row blocks so both v7x TensorCores get work
        tn = min(tn, _round_up(-(-n_rows // 2), 8))
    tn = min(tn, n_rows)   # tn == n_rows (full dim) is always a legal block shape
    return tn, tk


def _dice_row_sums(pred_flat, targ_flat):
    """pred_flat/targ_flat: [N, HW]. Returns (pt, ps, ts) row sums, each [N]."""
    n, hw = pred_flat.shape
    tn, tk = _choose_tiles(n, hw)
    grid = (pl.cdiv(n, tn), pl.cdiv(hw, tk))
    mask_cols = (hw % tk) != 0

    # VMEM budget: double-buffered input tiles + generous f32 temporaries.
    in_tile_bytes = tn * tk * (pred_flat.dtype.itemsize + targ_flat.dtype.itemsize)
    vmem_needed = 2 * in_tile_bytes + 8 * tn * tk * 4 + (1 << 20)
    vmem_limit = int(min(max(vmem_needed, 32 << 20), 60 << 20))  # stay under v7x's 64 MiB

    kernel = functools.partial(_dice_sums_kernel, hw=hw, tk=tk, mask_cols=mask_cols)

    row_spec = pl.BlockSpec((tn, 1), lambda i, j: (i, 0))
    out_shape = [jax.ShapeDtypeStruct((n, 1), jnp.float32)] * 3
    pt, ps, ts = pl.pallas_call(
        kernel,
        out_shape=out_shape,
        grid_spec=pltpu.PrefetchScalarGridSpec(
            num_scalar_prefetch=0,
            grid=grid,
            in_specs=[
                pl.BlockSpec((tn, tk), lambda i, j: (i, j)),
                pl.BlockSpec((tn, tk), lambda i, j: (i, j)),
            ],
            out_specs=[row_spec, row_spec, row_spec],
        ),
        compiler_params=pltpu.CompilerParams(
            dimension_semantics=("parallel", "arbitrary"),
            vmem_limit_bytes=vmem_limit),
    )(pred_flat, targ_flat)
    return pt[:, 0], ps[:, 0], ts[:, 0]


# --------------------------------------------------------------------------
# DiceLoss forward (sigmoid + per-organ BinaryDiceLoss + masked mean)
# --------------------------------------------------------------------------
@functools.partial(jax.jit, static_argnames=("organ_list", "smooth"))
def dice_loss(predict, target, organ_list, smooth=1.0):
    """predict/target: [B, C, D, H, W]; organ_list: static tuple of 1-based organ ids."""
    B, C, D, H, W = predict.shape
    pred_flat = predict.reshape(B * C * D, H * W)
    targ_flat = target.reshape(B * C * D, H * W)

    pt, ps, ts = _dice_row_sums(pred_flat, targ_flat)
    pt = pt.reshape(B, C, D)
    ps = ps.reshape(B, C, D)
    ts = ts.reshape(B, C, D)

    # BinaryDiceLoss over each (b, c) volume ("batch" dim inside it is D).
    # smooth is added to the denominator only, exactly as in the reference.
    dice_score = 2.0 * pt / (ps + ts + smooth)          # (B, C, D)
    per_bc_loss = jnp.mean(1.0 - dice_score, axis=-1)   # (B, C)

    # Organ selection: class c kept iff target[b, c] has any foreground AND
    # (c + 1) is in TEMPLATE['curvas'].
    target_sum = jnp.sum(ts, axis=-1)                   # (B, C)
    organ_mask = jnp.asarray(
        np.array([(c + 1) in organ_list for c in range(C)], dtype=np.bool_))
    valid = (target_sum != 0) & organ_mask[None, :]     # (B, C)

    count = jnp.sum(valid.astype(jnp.float32))
    total = jnp.sum(jnp.where(valid, per_bc_loss, 0.0))
    return jnp.where(count == 0, jnp.float32(1.0),
                     total / jnp.maximum(count, 1.0))


# Pure-JAX reference for validation (same math, jax.nn.sigmoid).
def _dice_loss_ref(predict, target, organ_list, smooth=1.0):
    B, C, D, H, W = predict.shape
    p = jax.nn.sigmoid(predict.astype(jnp.float32)).reshape(B, C, D, H * W)
    t = target.astype(jnp.float32).reshape(B, C, D, H * W)
    num = jnp.sum(p * t, axis=-1)
    den = jnp.sum(p, axis=-1) + jnp.sum(t, axis=-1) + smooth
    per_bc = jnp.mean(1.0 - 2.0 * num / den, axis=-1)
    t_sum = jnp.sum(t, axis=(2, 3))
    organ_mask = jnp.array([(c + 1) in organ_list for c in range(C)])
    valid = (t_sum != 0) & organ_mask[None, :]
    cnt = jnp.sum(valid)
    tot = jnp.sum(jnp.where(valid, per_bc, 0.0))
    return jnp.where(cnt == 0, jnp.float32(1.0), tot / jnp.maximum(cnt, 1))


if __name__ == "__main__":
    key = jax.random.PRNGKey(0)
    B, C, D, H, W = 2, 3, 4, 16, 16   # num_classes = 3 as in the module
    k1, k2 = jax.random.split(key)

    # bf16 inputs from the caller halve HBM read bytes of the memory-bound
    # kernel; all in-kernel math is f32.
    predict = jax.random.normal(k1, (B, C, D, H, W), dtype=jnp.bfloat16)
    target = (jax.random.uniform(k2, (B, C, D, H, W)) > 0.5).astype(jnp.bfloat16)
    target = target.at[0, 1].set(0.0)  # exercise the empty-organ masking path

    TEMPLATE = {"curvas": (1, 2, 3)}
    name = "curvas"                    # interface parity; unused in the math

    loss = dice_loss(predict, target, TEMPLATE[name], smooth=1.0)
    jax.block_until_ready(loss)

    ref = _dice_loss_ref(predict, target, TEMPLATE[name], smooth=1.0)
    assert jnp.isfinite(loss)
    assert jnp.allclose(loss, ref, rtol=1e-3, atol=1e-3), (loss, ref)
    print("KERNEL_OK")
</pallas_src>

<mosaic_0001>
module attributes {stable_mosaic.version = 11 : i64} {
  func.func @_dice_sums_kernel(%arg0: i32, %arg1: i32, %arg2: memref<16x256xbf16, #tpu.memory_space<vmem>>, %arg3: memref<16x256xbf16, #tpu.memory_space<vmem>>, %arg4: memref<16x1xf32, #tpu.memory_space<vmem>>, %arg5: memref<16x1xf32, #tpu.memory_space<vmem>>, %arg6: memref<16x1xf32, #tpu.memory_space<vmem>>) attributes {dimension_semantics = [#tpu.dimension_semantics<parallel>, #tpu.dimension_semantics<arbitrary>], iteration_bounds = array<i64: 2, 1>, scalar_prefetch = 0 : i64, scratch_operands = 0 : i64, tpu.core_type = #tpu.core_type<tc>, window_params = [{transform_indices = @transform_0, window_bounds = array<i64: 16, 256>}, {transform_indices = @transform_1, window_bounds = array<i64: 16, 256>}, {transform_indices = @transform_2, window_bounds = array<i64: 16, 1>}, {transform_indices = @transform_3, window_bounds = array<i64: 16, 1>}, {transform_indices = @transform_4, window_bounds = array<i64: 16, 1>}]} {
    %c0_i32 = arith.constant 0 : i32
    %0 = arith.cmpi eq, %arg1, %c0_i32 : i32
    %1 = arith.extui %0 : i1 to i32
    %c0_i32_0 = arith.constant 0 : i32
    %2 = arith.cmpi ne, %1, %c0_i32_0 : i32
    scf.if %2 {
      %cst_21 = arith.constant 0.000000e+00 : f32
      %30 = vector.broadcast %cst_21 : f32 to vector<16x1xf32>
      %c0_22 = arith.constant 0 : index
      %c0_23 = arith.constant 0 : index
      %31 = vector.load %arg4[%c0_22, %c0_23] : memref<16x1xf32, #tpu.memory_space<vmem>>, vector<16x1xf32>
      tpu.vector_store %arg4[%c0_22, %c0_23], %30 {strides = array<i32>} : memref<16x1xf32, #tpu.memory_space<vmem>>, vector<16x1xf32>,
      %cst_24 = arith.constant 0.000000e+00 : f32
      %32 = vector.broadcast %cst_24 : f32 to vector<16x1xf32>
      %c0_25 = arith.constant 0 : index
      %c0_26 = arith.constant 0 : index
      %33 = vector.load %arg5[%c0_25, %c0_26] : memref<16x1xf32, #tpu.memory_space<vmem>>, vector<16x1xf32>
      tpu.vector_store %arg5[%c0_25, %c0_26], %32 {strides = array<i32>} : memref<16x1xf32, #tpu.memory_space<vmem>>, vector<16x1xf32>,
      %cst_27 = arith.constant 0.000000e+00 : f32
      %34 = vector.broadcast %cst_27 : f32 to vector<16x1xf32>
      %c0_28 = arith.constant 0 : index
      %c0_29 = arith.constant 0 : index
      %35 = vector.load %arg6[%c0_28, %c0_29] : memref<16x1xf32, #tpu.memory_space<vmem>>, vector<16x1xf32>
      tpu.vector_store %arg6[%c0_28, %c0_29], %34 {strides = array<i32>} : memref<16x1xf32, #tpu.memory_space<vmem>>, vector<16x1xf32>,
    } else {
    }
    %c0 = arith.constant 0 : index
    %c0_1 = arith.constant 0 : index
    %3 = vector.load %arg2[%c0, %c0_1] : memref<16x256xbf16, #tpu.memory_space<vmem>>, vector<16x256xbf16>
    %4 = arith.extf %3 : vector<16x256xbf16> to vector<16x256xf32>
    %c0_2 = arith.constant 0 : index
    %c0_3 = arith.constant 0 : index
    %5 = vector.load %arg3[%c0_2, %c0_3] : memref<16x256xbf16, #tpu.memory_space<vmem>>, vector<16x256xbf16>
    %6 = arith.extf %5 : vector<16x256xbf16> to vector<16x256xf32>
    %cst = arith.constant 5.000000e-01 : f32
    %7 = vector.broadcast %cst : f32 to vector<16x256xf32>
    %8 = arith.mulf %7, %4 : vector<16x256xf32>
    %9 = math.tanh %8 : vector<16x256xf32>
    %cst_4 = arith.constant 1.000000e+00 : f32
    %10 = vector.broadcast %cst_4 : f32 to vector<16x256xf32>
    %11 = arith.addf %9, %10 : vector<16x256xf32>
    %cst_5 = arith.constant 5.000000e-01 : f32
    %12 = vector.broadcast %cst_5 : f32 to vector<16x256xf32>
    %13 = arith.mulf %12, %11 : vector<16x256xf32>
    %c0_6 = arith.constant 0 : index
    %c0_7 = arith.constant 0 : index
    %14 = vector.load %arg4[%c0_6, %c0_7] : memref<16x1xf32, #tpu.memory_space<vmem>>, vector<16x1xf32>
    %15 = arith.mulf %13, %6 : vector<16x256xf32>
    %cst_8 = arith.constant dense<0.000000e+00> : vector<16xf32>
    %16 = vector.multi_reduction <add>, %15, %cst_8 [1] : vector<16x256xf32> to vector<16xf32>
    %17 = vector.shape_cast %16 : vector<16xf32> to vector<16x1xf32>
    %18 = arith.addf %14, %17 : vector<16x1xf32>
    %c0_9 = arith.constant 0 : index
    %c0_10 = arith.constant 0 : index
    %19 = vector.load %arg4[%c0_9, %c0_10] : memref<16x1xf32, #tpu.memory_space<vmem>>, vector<16x1xf32>
    tpu.vector_store %arg4[%c0_9, %c0_10], %18 {strides = array<i32>} : memref<16x1xf32, #tpu.memory_space<vmem>>, vector<16x1xf32>,
    %c0_11 = arith.constant 0 : index
    %c0_12 = arith.constant 0 : index
    %20 = vector.load %arg5[%c0_11, %c0_12] : memref<16x1xf32, #tpu.memory_space<vmem>>, vector<16x1xf32>
    %cst_13 = arith.constant dense<0.000000e+00> : vector<16xf32>
    %21 = vector.multi_reduction <add>, %13, %cst_13 [1] : vector<16x256xf32> to vector<16xf32>
    %22 = vector.shape_cast %21 : vector<16xf32> to vector<16x1xf32>
    %23 = arith.addf %20, %22 : vector<16x1xf32>
    %c0_14 = arith.constant 0 : index
    %c0_15 = arith.constant 0 : index
    %24 = vector.load %arg5[%c0_14, %c0_15] : memref<16x1xf32, #tpu.memory_space<vmem>>, vector<16x1xf32>
    tpu.vector_store %arg5[%c0_14, %c0_15], %23 {strides = array<i32>} : memref<16x1xf32, #tpu.memory_space<vmem>>, vector<16x1xf32>,
    %c0_16 = arith.constant 0 : index
    %c0_17 = arith.constant 0 : index
    %25 = vector.load %arg6[%c0_16, %c0_17] : memref<16x1xf32, #tpu.memory_space<vmem>>, vector<16x1xf32>
    %cst_18 = arith.constant dense<0.000000e+00> : vector<16xf32>
    %26 = vector.multi_reduction <add>, %6, %cst_18 [1] : vector<16x256xf32> to vector<16xf32>
    %27 = vector.shape_cast %26 : vector<16xf32> to vector<16x1xf32>
    %28 = arith.addf %25, %27 : vector<16x1xf32>
    %c0_19 = arith.constant 0 : index
    %c0_20 = arith.constant 0 : index
    %29 = vector.load %arg6[%c0_19, %c0_20] : memref<16x1xf32, #tpu.memory_space<vmem>>, vector<16x1xf32>
    tpu.vector_store %arg6[%c0_19, %c0_20], %28 {strides = array<i32>} : memref<16x1xf32, #tpu.memory_space<vmem>>, vector<16x1xf32>,
    return
  }
  func.func @transform_0(%arg0: i32, %arg1: i32) -> (i32, i32) {
    %c0_i32 = arith.constant 0 : i32
    return %arg0, %arg1 : i32, i32
  }
  func.func @transform_1(%arg0: i32, %arg1: i32) -> (i32, i32) {
    %c0_i32 = arith.constant 0 : i32
    return %arg0, %arg1 : i32, i32
  }
  func.func @transform_2(%arg0: i32, %arg1: i32) -> (i32, i32) {
    %c0_i32 = arith.constant 0 : i32
    %c0_i32_0 = arith.constant 0 : i32
    return %arg0, %c0_i32 : i32, i32
  }
  func.func @transform_3(%arg0: i32, %arg1: i32) -> (i32, i32) {
    %c0_i32 = arith.constant 0 : i32
    %c0_i32_0 = arith.constant 0 : i32
    return %arg0, %c0_i32 : i32, i32
  }
  func.func @transform_4(%arg0: i32, %arg1: i32) -> (i32, i32) {
    %c0_i32 = arith.constant 0 : i32
    %c0_i32_0 = arith.constant 0 : i32
    return %arg0, %c0_i32 : i32, i32
  }
}

</mosaic_0001>

<llo_original>
// kernel: dice_loss.1
$region0: #{dice_loss.1}
  #allocation0 [shape = 'u32[]', space=smem, size = 0x4, offset = 0x4, fixed_abs, tag = 'smem constant byte address 0x4 - core index']
  #allocation1 [shape = 'u32[72,128]{1,0:T(1,128)}', space=vmem, size = 0x9000, scoped, tag = 'internal scratch']
  %s0 = inlined_call_operand.vmem [shape: bf16[24,256], index: 0, kind: input, shape index: {}]
  %s1 = inlined_call_operand.vmem [shape: bf16[24,256], index: 1, kind: input, shape index: {}]
  %s2 = inlined_call_operand.vmem [shape: f32[24,1], index: 2, kind: output, shape index: {0}]
  %s3 = inlined_call_operand.vmem [shape: f32[24,1], index: 3, kind: output, shape index: {1}]
  %s4 = inlined_call_operand.vmem [shape: f32[24,1], index: 4, kind: output, shape index: {2}]
  %5 = xla_tuple %s2, %s3, %s4
  %s6 = sld [smem:[#allocation0]]
  $region205: #{dice_loss.1} parent=0
    _
  %s8 = ssub.s32 1, %s6
  %s9 = scalar_select 0, %s8, %s6
  $region1: #{dice_loss.1} parent=0
    #allocation2 [shape = 'u8[16384]{0}', space=vmem, size = 0x4000, scoped, tag = 'output window, operand 0']
    #allocation3 [shape = 'u8[16384]{0}', space=vmem, size = 0x4000, scoped, tag = 'output window, operand 1']
    #allocation4 [shape = 'u8[16384]{0}', space=vmem, size = 0x4000, scoped, tag = 'output window, operand 2']
    loop: start=0, step=1, limit=4
    $region2: #{dice_loss.1} parent=1 // loop_pre_header
      _
    $region3: #{dice_loss.1} parent=1 // loop_header
      %s11 = sphi 0, %s15
      %p12 = scmp.ge.s32.totalorder %s11, 4
      %s18 = sphi 0, %s30
      %s19 = sphi 0, %s26
      %s20 = sphi 0, %s18
      %s21 = sphi 0, %s19
      %s22 = sphi 0, %s20
      %s23 = sphi 0, %s21
      %s35 = sphi 0, %s37
      %s38 = sphi 0, %s35
      %s39 = sphi 0, %s38
      %s55 = sphi 0, %s39
      %s63 = sphi 0, %s65
      %s66 = sphi 0, %s63
      %s67 = sphi 0, %s66
      %s83 = sphi 0, %s67
      %s89 = sphi 0, %s91
      %s92 = sphi 0, %s89
      %s93 = sphi 0, %s92
      %s109 = sphi 0, %s93
      %s115 = sphi 0, %s117
      %s118 = sphi 0, %s115
      %s119 = sphi 0, %s118
      %s135 = sphi 0, %s119
      %s141 = sphi 0, %s143
      %s144 = sphi 0, %s141
      %s145 = sphi 0, %s144
      %s161 = sphi 0, %s145
    $region4: #{dice_loss.1} parent=1 // loop_header_branch
      %14 = sbr.rel (%p12) target = $region8
    $region5: #{dice_loss.1} parent=1 // loop_body
      %s16 = ssub.s32 %s11, 1
      %s17 = ssub.s32 %s11, 2
      %s24 = sadd.s32 1, %s19
      %p25 = scmp.ge.s32.totalorder %s24, 1
      %s26 = scalar_select %p25, 0, %s24
      %s27 = sadd.s32 1, %s18
      %s28 = scalar_select %p25, %s27, %s18
      %p29 = scmp.ge.s32.totalorder %s28, 2
      %s30 = scalar_select %p29, 0, %s28
      %s31 = ssub.s32 %s18, %s30
      %s32 = ssub.s32 %s19, %s26
      %s33 = sor.u32 %s31, %s32
      %p34 = scmp.eq.s32.totalorder %s33, 0
      %s36 = sadd.s32 %s35, 1
      %s37 = scalar_select %p34, %s35, %s36
      %p40 = pneg %p34
      %p41 = scmp.eq.s32.totalorder %s11, 1
      %p42 = por %p40, %p41
      %p43 = scmp.ne.s32.totalorder %s35, %s38
      %p44 = scmp.eq.s32.totalorder %s11, 0
      %p45 = por %p43, %p44
      %p46 = scmp.ne.s32.totalorder %s35, %s38
      %p47 = scmp.eq.s32.totalorder %s16, 1
      %p48 = por %p46, %p47
      %p49 = scmp.ne.s32.totalorder %s38, %s39
      %p50 = scmp.eq.s32.totalorder %s16, 0
      %p51 = por %p49, %p50
      %p52 = scmp.ne.s32.totalorder %s38, %s39
      %p53 = scmp.eq.s32.totalorder %s17, 1
      %p54 = por %p52, %p53
      %p56 = scmp.ne.s32.totalorder %s39, %s55
      %p57 = scmp.eq.s32.totalorder %s17, 0
      %p58 = por %p56, %p57
      %s59 = ssub.s32 %s18, %s30
      %s60 = ssub.s32 %s19, %s26
      %s61 = sor.u32 %s59, %s60
      %p62 = scmp.eq.s32.totalorder %s61, 0
      %s64 = sadd.s32 %s63, 1
      %s65 = scalar_select %p62, %s63, %s64
      %p68 = pneg %p62
      %p69 = scmp.eq.s32.totalorder %s11, 1
      %p70 = por %p68, %p69
      %p71 = scmp.ne.s32.totalorder %s63, %s66
      %p72 = scmp.eq.s32.totalorder %s11, 0
      %p73 = por %p71, %p72
      %p74 = scmp.ne.s32.totalorder %s63, %s66
      %p75 = scmp.eq.s32.totalorder %s16, 1
      %p76 = por %p74, %p75
      %p77 = scmp.ne.s32.totalorder %s66, %s67
      %p78 = scmp.eq.s32.totalorder %s16, 0
      %p79 = por %p77, %p78
      %p80 = scmp.ne.s32.totalorder %s66, %s67
      %p81 = scmp.eq.s32.totalorder %s17, 1
      %p82 = por %p80, %p81
      %p84 = scmp.ne.s32.totalorder %s67, %s83
      %p85 = scmp.eq.s32.totalorder %s17, 0
      %p86 = por %p84, %p85
      %s87 = ssub.s32 %s18, %s30
      %p88 = scmp.eq.s32.totalorder %s87, 0
      %s90 = sadd.s32 %s89, 1
      %s91 = scalar_select %p88, %s89, %s90
      %p94 = pneg %p88
      %p95 = scmp.eq.s32.totalorder %s11, 1
      %p96 = por %p94, %p95
      %p97 = scmp.ne.s32.totalorder %s89, %s92
      %p98 = scmp.eq.s32.totalorder %s11, 0
      %p99 = por %p97, %p98
      %p100 = scmp.ne.s32.totalorder %s89, %s92
      %p101 = scmp.eq.s32.totalorder %s16, 1
      %p102 = por %p100, %p101
      %p103 = scmp.ne.s32.totalorder %s92, %s93
      %p104 = scmp.eq.s32.totalorder %s16, 0
      %p105 = por %p103, %p104
      %p106 = scmp.ne.s32.totalorder %s92, %s93
      %p107 = scmp.eq.s32.totalorder %s17, 1
      %p108 = por %p106, %p107
      %p110 = scmp.ne.s32.totalorder %s93, %s109
      %p111 = scmp.eq.s32.totalorder %s17, 0
      %p112 = por %p110, %p111
      %s113 = ssub.s32 %s18, %s30
      %p114 = scmp.eq.s32.totalorder %s113, 0
      %s116 = sadd.s32 %s115, 1
      %s117 = scalar_select %p114, %s115, %s116
      %p120 = pneg %p114
      %p121 = scmp.eq.s32.totalorder %s11, 1
      %p122 = por %p120, %p121
      %p123 = scmp.ne.s32.totalorder %s115, %s118
      %p124 = scmp.eq.s32.totalorder %s11, 0
      %p125 = por %p123, %p124
      %p126 = scmp.ne.s32.totalorder %s115, %s118
      %p127 = scmp.eq.s32.totalorder %s16, 1
      %p128 = por %p126, %p127
      %p129 = scmp.ne.s32.totalorder %s118, %s119
      %p130 = scmp.eq.s32.totalorder %s16, 0
      %p131 = por %p129, %p130
      %p132 = scmp.ne.s32.totalorder %s118, %s119
      %p133 = scmp.eq.s32.totalorder %s17, 1
      %p134 = por %p132, %p133
      %p136 = scmp.ne.s32.totalorder %s119, %s135
      %p137 = scmp.eq.s32.totalorder %s17, 0
      %p138 = por %p136, %p137
      %s139 = ssub.s32 %s18, %s30
      %p140 = scmp.eq.s32.totalorder %s139, 0
      %s142 = sadd.s32 %s141, 1
      %s143 = scalar_select %p140, %s141, %s142
      %p146 = pneg %p140
      %p147 = scmp.eq.s32.totalorder %s11, 1
      %p148 = por %p146, %p147
      %p149 = scmp.ne.s32.totalorder %s141, %s144
      %p150 = scmp.eq.s32.totalorder %s11, 0
      %p151 = por %p149, %p150
      %p152 = scmp.ne.s32.totalorder %s141, %s144
      %p153 = scmp.eq.s32.totalorder %s16, 1
      %p154 = por %p152, %p153
      %p155 = scmp.ne.s32.totalorder %s144, %s145
      %p156 = scmp.eq.s32.totalorder %s16, 0
      %p157 = por %p155, %p156
      %p158 = scmp.ne.s32.totalorder %s144, %s145
      %p159 = scmp.eq.s32.totalorder %s17, 1
      %p160 = por %p158, %p159
      %p162 = scmp.ne.s32.totalorder %s145, %s161
      %p163 = scmp.eq.s32.totalorder %s17, 0
      %p164 = por %p162, %p163
      %p165 = scmp.le.s32.totalorder 1, %s11
      %p166 = scmp.lt.s32.totalorder %s11, 3
      %p167 = pnand %p165, %p166
      %p168 = pneg %p167
      // Predicated region
      $region9: #{dice_loss.1} parent=5 // pred_check
        _
      $region10: #{dice_loss.1} parent=5 // pred_check_branch
        %170 = sbr.rel (%p167) target = $region12
      $region11: #{dice_loss.1} parent=5 // pred_region
        %s171 = ssub.s32 %s11, 1
      $region12: #{dice_loss.1} parent=5 // pred_fallthru
        _
      %p172 = scmp.lt.s32.totalorder %s11, 2
      // Predicated region
      $region13: #{dice_loss.1} parent=5 // pred_check
        %p173 = pneg %p172
      $region14: #{dice_loss.1} parent=5 // pred_check_branch
        %175 = sbr.rel (%p173) target = $region16
      $region15: #{dice_loss.1} parent=5 // pred_region
        // Predicated region
        $region17: #{dice_loss.1} parent=15 // pred_check
          %p176 = pneg %p45
        $region18: #{dice_loss.1} parent=15 // pred_check_branch
          %178 = sbr.rel (%p176) target = $region20
        $region19: #{dice_loss.1} parent=15 // pred_region
          %s179 = smul.u32 2, %s18
          %s180 = smul.u32 2, %s19
          %s181 = ssub.s32 3, %s179
          %p182 = scmp.lt.s32.totalorder %s181, 2
          %s183 = scalar_select %p182, %s181, 2
          %s184 = smul.u32 4, %s183
          %s185 = smul.u32 %s184, 2
          %p186 = scmp.lt.s32.totalorder %s179, 2
          %s187 = scalar_select %p186, %s179, 2
          %p188 = scmp.lt.s32.totalorder %s180, 1
          %s189 = scalar_select %p188, %s180, 1
          %s190 = smul.addr %s187, 2
          %s191 = sadd.s32 %s189, %s190
          %s192 = smul.addr %s191, 4
          %s193 = scalar_lea.vmem %s0, %s192
          %s194 = smul.u32 2, %s18
          %s195 = smul.u32 2, %s19
          %s196 = ssub.s32 3, %s194
          %p197 = scmp.lt.s32.totalorder %s196, 2
          %s198 = scalar_select %p197, %s196, 2
          %s199 = smul.u32 4, %s198
          %s200 = smul.u32 %s199, 2
        $region20: #{dice_loss.1} parent=15 // pred_fallthru
          _
        // Predicated region
        $region21: #{dice_loss.1} parent=15 // pred_check
          %p201 = pneg %p73
        $region22: #{dice_loss.1} parent=15 // pred_check_branch
          %203 = sbr.rel (%p201) target = $region24
        $region23: #{dice_loss.1} parent=15 // pred_region
          %s204 = smul.u32 2, %s18
          %s205 = smul.u32 2, %s19
          %s206 = ssub.s32 3, %s204
          %p207 = scmp.lt.s32.totalorder %s206, 2
          %s208 = scalar_select %p207, %s206, 2
          %s209 = smul.u32 4, %s208
          %s210 = smul.u32 %s209, 2
          %p211 = scmp.lt.s32.totalorder %s204, 2
          %s212 = scalar_select %p211, %s204, 2
          %p213 = scmp.lt.s32.totalorder %s205, 1
          %s214 = scalar_select %p213, %s205, 1
          %s215 = smul.addr %s212, 2
          %s216 = sadd.s32 %s214, %s215
          %s217 = smul.addr %s216, 4
          %s218 = scalar_lea.vmem %s1, %s217
          %s219 = smul.u32 2, %s18
          %s220 = smul.u32 2, %s19
          %s221 = ssub.s32 3, %s219
          %p222 = scmp.lt.s32.totalorder %s221, 2
          %s223 = scalar_select %p222, %s221, 2
          %s224 = smul.u32 4, %s223
          %s225 = smul.u32 %s224, 2
        $region24: #{dice_loss.1} parent=15 // pred_fallthru
          _
      $region16: #{dice_loss.1} parent=5 // pred_fallthru
        _
      %p226 = scmp.le.s32.totalorder 1, %s11
      %p227 = scmp.lt.s32.totalorder %s11, 3
      %p228 = pnand %p226, %p227
      %p229 = pneg %p228
      // Predicated region
      $region25: #{dice_loss.1} parent=5 // pred_check
        _
      $region26: #{dice_loss.1} parent=5 // pred_check_branch
        %231 = sbr.rel (%p228) target = $region28
      $region27: #{dice_loss.1} parent=5 // pred_region
        %s232 = ssub.s32 %s11, 1
        %s233 = smul.u32 2, %s20
        %s234 = smul.u32 2, %s21
        %s235 = ssub.s32 3, %s233
        %p236 = scmp.lt.s32.totalorder %s235, 2
        %s237 = scalar_select %p236, %s235, 2
        %s238 = smul.u32 4, %s237
        %s239 = smul.u32 %s238, 2
        %p240 = scmp.lt.s32.totalorder %s233, 2
        %s241 = scalar_select %p240, %s233, 2
        %p242 = scmp.lt.s32.totalorder %s234, 1
        %s243 = scalar_select %p242, %s234, 1
        %s244 = smul.addr %s241, 2
        %s245 = sadd.s32 %s243, %s244
        %s246 = smul.addr %s245, 4
        %s247 = scalar_lea.vmem %s0, %s246
        %p248 = pneg %p51
        %p249 = pneg %p48
        %s250 = smul.u32 2, %s20
        %s251 = smul.u32 2, %s21
        %s252 = ssub.s32 3, %s250
        %p253 = scmp.lt.s32.totalorder %s252, 2
        %s254 = scalar_select %p253, %s252, 2
        %s255 = smul.u32 4, %s254
        %s256 = smul.u32 %s255, 2
        %p257 = scmp.lt.s32.totalorder %s250, 2
        %s258 = scalar_select %p257, %s250, 2
        %p259 = scmp.lt.s32.totalorder %s251, 1
        %s260 = scalar_select %p259, %s251, 1
        %s261 = smul.addr %s258, 2
        %s262 = sadd.s32 %s260, %s261
        %s263 = smul.addr %s262, 4
        %s264 = scalar_lea.vmem %s1, %s263
        %p265 = pneg %p79
        %p266 = pneg %p76
        %p267 = pneg %p105
        %p268 = pneg %p102
        %s269 = sand.u32 %s92, 1
        %s270 = sand.u32 %s92, 1
        %s271 = smul.addr %s270, 16
        %s272 = scalar_lea.vmem [#allocation2], %s271
        %p273 = pneg %p131
        %p274 = pneg %p128
        %s275 = sand.u32 %s118, 1
        %s276 = sand.u32 %s118, 1
        %s277 = smul.addr %s276, 16
        %s278 = scalar_lea.vmem [#allocation3], %s277
        %p279 = pneg %p157
        %p280 = pneg %p154
        %s281 = sand.u32 %s144, 1
        %s282 = sand.u32 %s144, 1
        %s283 = smul.addr %s282, 16
        %s284 = scalar_lea.vmem [#allocation4], %s283
        %s285 = smul.u32 2, %s20
        %s286 = smul.u32 2, %s21
        %s287 = ssub.s32 3, %s285
        %p288 = scmp.lt.s32.totalorder %s287, 2
        %s289 = scalar_select %p288, %s287, 2
        %s290 = smul.u32 4, %s289
        %s291 = smul.u32 %s290, 2
        %p292 = scmp.lt.s32.totalorder %s285, 2
        %s293 = scalar_select %p292, %s285, 2
        %p294 = scmp.lt.s32.totalorder %s286, 1
        %s295 = scalar_select %p294, %s286, 1
        %s296 = smul.addr %s293, 2
        %s297 = sadd.s32 %s295, %s296
        %s298 = smul.addr %s297, 4
        %s299 = scalar_lea.vmem %s0, %s298
        %s300 = smul.u32 2, %s20
        %s301 = smul.u32 2, %s21
        %s302 = ssub.s32 3, %s300
        %p303 = scmp.lt.s32.totalorder %s302, 2
        %s304 = scalar_select %p303, %s302, 2
        %s305 = smul.u32 4, %s304
        %s306 = smul.u32 %s305, 2
        %s307 = smul.u32 2, %s20
        %s308 = smul.u32 2, %s21
        %s309 = ssub.s32 3, %s307
        %p310 = scmp.lt.s32.totalorder %s309, 2
        %s311 = scalar_select %p310, %s309, 2
        %s312 = smul.u32 4, %s311
        %s313 = smul.u32 %s312, 2
        %p314 = scmp.lt.s32.totalorder %s307, 2
        %s315 = scalar_select %p314, %s307, 2
        %p316 = scmp.lt.s32.totalorder %s308, 1
        %s317 = scalar_select %p316, %s308, 1
        %s318 = smul.addr %s315, 2
        %s319 = sadd.s32 %s317, %s318
        %s320 = smul.addr %s319, 4
        %s321 = scalar_lea.vmem %s1, %s320
        %s322 = smul.u32 2, %s20
        %s323 = smul.u32 2, %s21
        %s324 = ssub.s32 3, %s322
        %p325 = scmp.lt.s32.totalorder %s324, 2
        %s326 = scalar_select %p325, %s324, 2
        %s327 = smul.u32 4, %s326
        %s328 = smul.u32 %s327, 2
        %s329 = smul.u32 2, %s20
        %s330 = ssub.s32 3, %s329
        %p331 = scmp.lt.s32.totalorder %s330, 2
        %s332 = scalar_select %p331, %s330, 2
        %s333 = smul.u32 8, %s332
        %s334 = smul.u32 2, %s20
        %s335 = ssub.s32 3, %s334
        %p336 = scmp.lt.s32.totalorder %s335, 2
        %s337 = scalar_select %p336, %s335, 2
        %s338 = smul.u32 8, %s337
        %s339 = smul.u32 2, %s20
        %s340 = ssub.s32 3, %s339
        %p341 = scmp.lt.s32.totalorder %s340, 2
        %s342 = scalar_select %p341, %s340, 2
        %s343 = smul.u32 8, %s342
        %p344 = scmp.eq.s32.totalorder %s21, 0
        // Predicated region
        $region29: #{dice_loss.1} parent=27 // pred_check
          %p345 = pneg %p344
        $region30: #{dice_loss.1} parent=27 // pred_check_branch
          %347 = sbr.rel (%p345) target = $region32
        $region31: #{dice_loss.1} parent=27 // pred_region
          %vm348 = vcmask 7168
          %349 = vst.msk [vmem:[%s272] sm:$0xff] %vm348, 0.0
          %350 = vst.msk [vmem:[%s272 + $0x8] sm:$0xff] %vm348, 0.0
          %351 = vst.msk [vmem:[%s278] sm:$0xff] %vm348, 0.0
          %352 = vst.msk [vmem:[%s278 + $0x8] sm:$0xff] %vm348, 0.0
          %353 = vst.msk [vmem:[%s284] sm:$0xff] %vm348, 0.0
          %354 = vst.msk [vmem:[%s284 + $0x8] sm:$0xff] %vm348, 0.0
        $region32: #{dice_loss.1} parent=27 // pred_fallthru
          _
        %v355 = vld [vmem:[%s299] sm:$0xff]
        %v356 = vld [vmem:[%s299 + $0x8] sm:$0xff]
        %v357 = vunpack.c.l.bf16 %v355
        %v358 = vunpack.c.h.bf16 %v355
        %v359 = vunpack.c.l.bf16 %v356
        %v360 = vunpack.c.h.bf16 %v356
        %v361 = vld [vmem:[%s321] sm:$0xff]
        %v362 = vld [vmem:[%s321 + $0x8] sm:$0xff]
        %v363 = vunpack.c.l.bf16 %v361
        %v364 = vunpack.c.h.bf16 %v361
        %v365 = vunpack.c.l.bf16 %v362
        %v366 = vunpack.c.h.bf16 %v362
        %v367 = vmul.f32 %v357, 0.5
        %v368 = vmul.f32 %v358, 0.5
        %v369 = vmul.f32 %v359, 0.5
        %v370 = vmul.f32 %v360, 0.5
        %v371 = vtanh.pop %v367
        %v372 = vtanh.pop %v368
        %v373 = vtanh.pop %v369
        %v374 = vtanh.pop %v370
        %v375 = vadd.f32 %v371, 1.0
        %v376 = vadd.f32 %v372, 1.0
        %v377 = vadd.f32 %v373, 1.0
        %v378 = vadd.f32 %v374, 1.0
        %v379 = vmul.f32 %v375, 0.5
        %v380 = vmul.f32 %v376, 0.5
        %v381 = vmul.f32 %v377, 0.5
        %v382 = vmul.f32 %v378, 0.5
        %v383 = vld [vmem:[%s272] sm:$0xff]
        %v384 = vld [vmem:[%s272 + $0x8] sm:$0xff]
        %v385 = vmul.f32 %v379, %v363
        %v386 = vmul.f32 %v380, %v364
        %v387 = vmul.f32 %v381, %v365
        %v388 = vmul.f32 %v382, %v366
        %v389 = vadd.f32 %v385, %v386
        %390 = vadd.xlane.f32.xlu0 %v389
        %v391 = vpop.xlane.xlu0 %390
        %v392 = vadd.f32 %v387, %v388
        %393 = vadd.xlane.f32.xlu0 %v392
        %v394 = vpop.xlane.xlu0 %393
        %v395 = vadd.f32 %v383, %v391
        %v396 = vadd.f32 %v384, %v394
        %vm397 = vcmask 7168
        %398 = vst.msk [vmem:[%s272] sm:$0xff] %vm397, %v395
        %399 = vst.msk [vmem:[%s272 + $0x8] sm:$0xff] %vm397, %v396
        %v400 = vld [vmem:[%s278] sm:$0xff]
        %v401 = vld [vmem:[%s278 + $0x8] sm:$0xff]
        %v402 = vadd.f32 %v379, %v380
        %403 = vadd.xlane.f32.xlu0 %v402
        %v404 = vpop.xlane.xlu0 %403
        %v405 = vadd.f32 %v381, %v382
        %406 = vadd.xlane.f32.xlu0 %v405
        %v407 = vpop.xlane.xlu0 %406
        %v408 = vadd.f32 %v400, %v404
        %v409 = vadd.f32 %v401, %v407
        %410 = vst.msk [vmem:[%s278] sm:$0xff] %vm397, %v408
        %411 = vst.msk [vmem:[%s278 + $0x8] sm:$0xff] %vm397, %v409
        %v412 = vld [vmem:[%s284] sm:$0xff]
        %v413 = vld [vmem:[%s284 + $0x8] sm:$0xff]
        %v414 = vadd.f32 %v363, %v364
        %415 = vadd.xlane.f32.xlu0 %v414
        %v416 = vpop.xlane.xlu0 %415
        %v417 = vadd.f32 %v365, %v366
        %418 = vadd.xlane.f32.xlu0 %v417
        %v419 = vpop.xlane.xlu0 %418
        %v420 = vadd.f32 %v412, %v416
        %v421 = vadd.f32 %v413, %v419
        %422 = vst.msk [vmem:[%s284] sm:$0xff] %vm397, %v420
        %423 = vst.msk [vmem:[%s284 + $0x8] sm:$0xff] %vm397, %v421
        %s424 = sand.u32 %s92, 1
        %s425 = sand.u32 %s92, 1
        %s426 = smul.addr %s425, 16
        %s427 = scalar_lea.vmem [#allocation2], %s426
        %s428 = sand.u32 %s118, 1
        %s429 = sand.u32 %s118, 1
        %s430 = smul.addr %s429, 16
        %s431 = scalar_lea.vmem [#allocation3], %s430
        %s432 = sand.u32 %s144, 1
        %s433 = sand.u32 %s144, 1
        %s434 = smul.addr %s433, 16
        %s435 = scalar_lea.vmem [#allocation4], %s434
        // Predicated region
        $region33: #{dice_loss.1} parent=27 // pred_check
          %p436 = pneg %p102
        $region34: #{dice_loss.1} parent=27 // pred_check_branch
          %438 = sbr.rel (%p436) target = $region36
        $region35: #{dice_loss.1} parent=27 // pred_region
          %s439 = smul.u32 2, %s20
          %s440 = ssub.s32 3, %s439
          %p441 = scmp.lt.s32.totalorder %s440, 2
          %s442 = scalar_select %p441, %s440, 2
          %s443 = smul.u32 8, %s442
          %p444 = scmp.ne.s32.totalorder 0, %s443
          %s445 = smul.addr %s439, 8
          %s446 = scalar_lea.vmem %s2, %s445
          // Predicated region
          $region37: #{dice_loss.1} parent=35 // pred_check
            %p447 = pneg %p444
          $region38: #{dice_loss.1} parent=35 // pred_check_branch
            %449 = sbr.rel (%p447) target = $region40
          $region39: #{dice_loss.1} parent=35 // pred_region
            // Predicated region
            $region41: #{dice_loss.1} parent=39 // pred_check
              _
            $region42: #{dice_loss.1} parent=39 // pred_check_branch
              %451 = sbr.rel (0) target = $region44
            $region43: #{dice_loss.1} parent=39 // pred_region
              // Predicated region
              $region63: #{dice_loss.1} parent=43 // pred_check
                _
              $region64: #{dice_loss.1} parent=43 // pred_check_branch
                %503 = sbr.rel (0) target = $region66
              $region65: #{dice_loss.1} parent=43 // pred_region
                %s504 = sshrl.u32 %s442, 1
                // While loop
                $region67: #{dice_loss.1} parent=65 // loop_pre_header
                  _
                $region68: #{dice_loss.1} parent=65 // loop_header
                  %s506 = sphi 0, %s508
                  %p507 = scmp.ge.s32.totalorder %s506, %s504
                  %s511 = sphi 0, %s520
                  %s512 = sphi %s427, %s523
                  %s513 = sphi %s446, %s524
                $region69: #{dice_loss.1} parent=65 // loop_header_branch
                  %510 = sbr.rel (%p507) target = $region73
                $region70: #{dice_loss.1} parent=65 // loop_body
                  %v514 = vld [vmem:[%s512] sm:$0xff]
                  %515 = vst [vmem:[%s513] sm:$0xff] %v514
                  %v516 = vld [vmem:[%s512 + $0x8] sm:$0xff]
                  %517 = vst [vmem:[%s513 + $0x8] sm:$0xff] %v516
                  %s518 = sadd.s32 1, %s511
                  %p519 = scmp.ge.s32.totalorder %s518, %s504
                  %s520 = scalar_select %p519, 0, %s518
                  %s521 = smul.u32 %s520, 16
                  %s522 = smul.u32 %s520, 16
                  %s523 = scalar_lea.vmem %s427, %s521 [#allocation2]
                  %s524 = scalar_lea.vmem %s446, %s522
                $region71: #{dice_loss.1} parent=65 // loop_footer
                  %s508 = sadd.s32 %s506, 1
                $region72: #{dice_loss.1} parent=65 // loop_footer_branch
                  %505 = sbr.rel target = $region68
                $region73: #{dice_loss.1} parent=65 // loop_exit
                  _
                %s525 = sshrl.u32 %s442, 1
                %s526 = sand.u32 %s442, 1
                %s527 = smul.u32 %s525, 2
                %s528 = smul.u32 8, %s527
                %s529 = scalar_lea.vmem %s427, %s528 [#allocation2]
                %s530 = smul.u32 8, %s527
                %s531 = scalar_lea.vmem %s446, %s530
                // While loop
                $region74: #{dice_loss.1} parent=65 // loop_pre_header
                  _
                $region75: #{dice_loss.1} parent=65 // loop_header
                  %s533 = sphi 0, %s535
                  %p534 = scmp.ge.s32.totalorder %s533, %s526
                  %s538 = sphi 0, %s545
                  %s539 = sphi %s529, %s548
                  %s540 = sphi %s531, %s549
                $region76: #{dice_loss.1} parent=65 // loop_header_branch
                  %537 = sbr.rel (%p534) target = $region80
                $region77: #{dice_loss.1} parent=65 // loop_body
                  %v541 = vld [vmem:[%s539] sm:$0xff]
                  %542 = vst [vmem:[%s540] sm:$0xff] %v541
                  %s543 = sadd.s32 1, %s538
                  %p544 = scmp.ge.s32.totalorder %s543, %s526
                  %s545 = scalar_select %p544, 0, %s543
                  %s546 = smul.u32 %s545, 8
                  %s547 = smul.u32 %s545, 8
                  %s548 = scalar_lea.vmem %s529, %s546 [#allocation2]
                  %s549 = scalar_lea.vmem %s531, %s547
                $region78: #{dice_loss.1} parent=65 // loop_footer
                  %s535 = sadd.s32 %s533, 1
                $region79: #{dice_loss.1} parent=65 // loop_footer_branch
                  %532 = sbr.rel target = $region75
                $region80: #{dice_loss.1} parent=65 // loop_exit
                  _
              $region66: #{dice_loss.1} parent=43 // pred_fallthru
                _
              // Predicated region
              $region81: #{dice_loss.1} parent=43 // pred_check
                _
              $region82: #{dice_loss.1} parent=43 // pred_check_branch
                %551 = sbr.rel target = $region84
              $region83: #{dice_loss.1} parent=43 // pred_region
                _
              $region84: #{dice_loss.1} parent=43 // pred_fallthru
                _
            $region44: #{dice_loss.1} parent=39 // pred_fallthru
              _
            // Predicated region
            $region45: #{dice_loss.1} parent=39 // pred_check
              _
            $region46: #{dice_loss.1} parent=39 // pred_check_branch
              %453 = sbr.rel target = $region48
            $region47: #{dice_loss.1} parent=39 // pred_region
              %s455 = ssub.s32 256, 1
              %s456 = sshrl.u32 %s442, 1
              // While loop
              $region49: #{dice_loss.1} parent=47 // loop_pre_header
                _
              $region50: #{dice_loss.1} parent=47 // loop_header
                %s458 = sphi 0, %s460
                %p459 = scmp.ge.s32.totalorder %s458, %s456
                %s463 = sphi 0, %s472
                %s464 = sphi %s427, %s475
                %s465 = sphi %s446, %s476
              $region51: #{dice_loss.1} parent=47 // loop_header_branch
                %462 = sbr.rel (%p459) target = $region55
              $region52: #{dice_loss.1} parent=47 // loop_body
                %v466 = vld [vmem:[%s464] sm:%s455]
                %467 = vst [vmem:[%s465] sm:%s455] %v466
                %v468 = vld [vmem:[%s464 + $0x8] sm:%s455]
                %469 = vst [vmem:[%s465 + $0x8] sm:%s455] %v468
                %s470 = sadd.s32 1, %s463
                %p471 = scmp.ge.s32.totalorder %s470, %s456
                %s472 = scalar_select %p471, 0, %s470
                %s473 = smul.u32 %s472, 16
                %s474 = smul.u32 %s472, 16
                %s475 = scalar_lea.vmem %s427, %s473 [#allocation2]
                %s476 = scalar_lea.vmem %s446, %s474
              $region53: #{dice_loss.1} parent=47 // loop_footer
                %s460 = sadd.s32 %s458, 1
              $region54: #{dice_loss.1} parent=47 // loop_footer_branch
                %457 = sbr.rel target = $region50
              $region55: #{dice_loss.1} parent=47 // loop_exit
                _
              %s477 = sshrl.u32 %s442, 1
              %s478 = sand.u32 %s442, 1
              %s479 = smul.u32 %s477, 2
              %s480 = smul.u32 8, %s479
              %s481 = scalar_lea.vmem %s427, %s480 [#allocation2]
              %s482 = smul.u32 8, %s479
              %s483 = scalar_lea.vmem %s446, %s482
              // While loop
              $region56: #{dice_loss.1} parent=47 // loop_pre_header
                _
              $region57: #{dice_loss.1} parent=47 // loop_header
                %s485 = sphi 0, %s487
                %p486 = scmp.ge.s32.totalorder %s485, %s478
                %s490 = sphi 0, %s497
                %s491 = sphi %s481, %s500
                %s492 = sphi %s483, %s501
              $region58: #{dice_loss.1} parent=47 // loop_header_branch
                %489 = sbr.rel (%p486) target = $region62
              $region59: #{dice_loss.1} parent=47 // loop_body
                %v493 = vld [vmem:[%s491] sm:%s455]
                %494 = vst [vmem:[%s492] sm:%s455] %v493
                %s495 = sadd.s32 1, %s490
                %p496 = scmp.ge.s32.totalorder %s495, %s478
                %s497 = scalar_select %p496, 0, %s495
                %s498 = smul.u32 %s497, 8
                %s499 = smul.u32 %s497, 8
                %s500 = scalar_lea.vmem %s481, %s498 [#allocation2]
                %s501 = scalar_lea.vmem %s483, %s499
              $region60: #{dice_loss.1} parent=47 // loop_footer
                %s487 = sadd.s32 %s485, 1
              $region61: #{dice_loss.1} parent=47 // loop_footer_branch
                %484 = sbr.rel target = $region57
              $region62: #{dice_loss.1} parent=47 // loop_exit
                _
            $region48: #{dice_loss.1} parent=39 // pred_fallthru
              _
          $region40: #{dice_loss.1} parent=35 // pred_fallthru
            _
          %552 = vnop
        $region36: #{dice_loss.1} parent=27 // pred_fallthru
          _
        // Predicated region
        $region85: #{dice_loss.1} parent=27 // pred_check
          %p553 = pneg %p128
        $region86: #{dice_loss.1} parent=27 // pred_check_branch
          %555 = sbr.rel (%p553) target = $region88
        $region87: #{dice_loss.1} parent=27 // pred_region
          %s556 = smul.u32 2, %s20
          %s557 = ssub.s32 3, %s556
          %p558 = scmp.lt.s32.totalorder %s557, 2
          %s559 = scalar_select %p558, %s557, 2
          %s560 = smul.u32 8, %s559
          %p561 = scmp.ne.s32.totalorder 0, %s560
          %s562 = smul.addr %s556, 8
          %s563 = scalar_lea.vmem %s3, %s562
          // Predicated region
          $region89: #{dice_loss.1} parent=87 // pred_check
            %p564 = pneg %p561
          $region90: #{dice_loss.1} parent=87 // pred_check_branch
            %566 = sbr.rel (%p564) target = $region92
          $region91: #{dice_loss.1} parent=87 // pred_region
            // Predicated region
            $region93: #{dice_loss.1} parent=91 // pred_check
              _
            $region94: #{dice_loss.1} parent=91 // pred_check_branch
              %568 = sbr.rel (0) target = $region96
            $region95: #{dice_loss.1} parent=91 // pred_region
              // Predicated region
              $region115: #{dice_loss.1} parent=95 // pred_check
                _
              $region116: #{dice_loss.1} parent=95 // pred_check_branch
                %620 = sbr.rel (0) target = $region118
              $region117: #{dice_loss.1} parent=95 // pred_region
                %s621 = sshrl.u32 %s559, 1
                // While loop
                $region119: #{dice_loss.1} parent=117 // loop_pre_header
                  _
                $region120: #{dice_loss.1} parent=117 // loop_header
                  %s623 = sphi 0, %s625
                  %p624 = scmp.ge.s32.totalorder %s623, %s621
                  %s628 = sphi 0, %s637
                  %s629 = sphi %s431, %s640
                  %s630 = sphi %s563, %s641
                $region121: #{dice_loss.1} parent=117 // loop_header_branch
                  %627 = sbr.rel (%p624) target = $region125
                $region122: #{dice_loss.1} parent=117 // loop_body
                  %v631 = vld [vmem:[%s629] sm:$0xff]
                  %632 = vst [vmem:[%s630] sm:$0xff] %v631
                  %v633 = vld [vmem:[%s629 + $0x8] sm:$0xff]
                  %634 = vst [vmem:[%s630 + $0x8] sm:$0xff] %v633
                  %s635 = sadd.s32 1, %s628
                  %p636 = scmp.ge.s32.totalorder %s635, %s621
                  %s637 = scalar_select %p636, 0, %s635
                  %s638 = smul.u32 %s637, 16
                  %s639 = smul.u32 %s637, 16
                  %s640 = scalar_lea.vmem %s431, %s638 [#allocation3]
                  %s641 = scalar_lea.vmem %s563, %s639
                $region123: #{dice_loss.1} parent=117 // loop_footer
                  %s625 = sadd.s32 %s623, 1
                $region124: #{dice_loss.1} parent=117 // loop_footer_branch
                  %622 = sbr.rel target = $region120
                $region125: #{dice_loss.1} parent=117 // loop_exit
                  _
                %s642 = sshrl.u32 %s559, 1
                %s643 = sand.u32 %s559, 1
                %s644 = smul.u32 %s642, 2
                %s645 = smul.u32 8, %s644
                %s646 = scalar_lea.vmem %s431, %s645 [#allocation3]
                %s647 = smul.u32 8, %s644
                %s648 = scalar_lea.vmem %s563, %s647
                // While loop
                $region126: #{dice_loss.1} parent=117 // loop_pre_header
                  _
                $region127: #{dice_loss.1} parent=117 // loop_header
                  %s650 = sphi 0, %s652
                  %p651 = scmp.ge.s32.totalorder %s650, %s643
                  %s655 = sphi 0, %s662
                  %s656 = sphi %s646, %s665
                  %s657 = sphi %s648, %s666
                $region128: #{dice_loss.1} parent=117 // loop_header_branch
                  %654 = sbr.rel (%p651) target = $region132
                $region129: #{dice_loss.1} parent=117 // loop_body
                  %v658 = vld [vmem:[%s656] sm:$0xff]
                  %659 = vst [vmem:[%s657] sm:$0xff] %v658
                  %s660 = sadd.s32 1, %s655
                  %p661 = scmp.ge.s32.totalorder %s660, %s643
                  %s662 = scalar_select %p661, 0, %s660
                  %s663 = smul.u32 %s662, 8
                  %s664 = smul.u32 %s662, 8
                  %s665 = scalar_lea.vmem %s646, %s663 [#allocation3]
                  %s666 = scalar_lea.vmem %s648, %s664
                $region130: #{dice_loss.1} parent=117 // loop_footer
                  %s652 = sadd.s32 %s650, 1
                $region131: #{dice_loss.1} parent=117 // loop_footer_branch
                  %649 = sbr.rel target = $region127
                $region132: #{dice_loss.1} parent=117 // loop_exit
                  _
              $region118: #{dice_loss.1} parent=95 // pred_fallthru
                _
              // Predicated region
              $region133: #{dice_loss.1} parent=95 // pred_check
                _
              $region134: #{dice_loss.1} parent=95 // pred_check_branch
                %668 = sbr.rel target = $region136
              $region135: #{dice_loss.1} parent=95 // pred_region
                _
              $region136: #{dice_loss.1} parent=95 // pred_fallthru
                _
            $region96: #{dice_loss.1} parent=91 // pred_fallthru
              _
            // Predicated region
            $region97: #{dice_loss.1} parent=91 // pred_check
              _
            $region98: #{dice_loss.1} parent=91 // pred_check_branch
              %570 = sbr.rel target = $region100
            $region99: #{dice_loss.1} parent=91 // pred_region
              %s572 = ssub.s32 256, 1
              %s573 = sshrl.u32 %s559, 1
              // While loop
              $region101: #{dice_loss.1} parent=99 // loop_pre_header
                _
              $region102: #{dice_loss.1} parent=99 // loop_header
                %s575 = sphi 0, %s577
                %p576 = scmp.ge.s32.totalorder %s575, %s573
                %s580 = sphi 0, %s589
                %s581 = sphi %s431, %s592
                %s582 = sphi %s563, %s593
              $region103: #{dice_loss.1} parent=99 // loop_header_branch
                %579 = sbr.rel (%p576) target = $region107
              $region104: #{dice_loss.1} parent=99 // loop_body
                %v583 = vld [vmem:[%s581] sm:%s572]
                %584 = vst [vmem:[%s582] sm:%s572] %v583
                %v585 = vld [vmem:[%s581 + $0x8] sm:%s572]
                %586 = vst [vmem:[%s582 + $0x8] sm:%s572] %v585
                %s587 = sadd.s32 1, %s580
                %p588 = scmp.ge.s32.totalorder %s587, %s573
                %s589 = scalar_select %p588, 0, %s587
                %s590 = smul.u32 %s589, 16
                %s591 = smul.u32 %s589, 16
                %s592 = scalar_lea.vmem %s431, %s590 [#allocation3]
                %s593 = scalar_lea.vmem %s563, %s591
              $region105: #{dice_loss.1} parent=99 // loop_footer
                %s577 = sadd.s32 %s575, 1
              $region106: #{dice_loss.1} parent=99 // loop_footer_branch
                %574 = sbr.rel target = $region102
              $region107: #{dice_loss.1} parent=99 // loop_exit
                _
              %s594 = sshrl.u32 %s559, 1
              %s595 = sand.u32 %s559, 1
              %s596 = smul.u32 %s594, 2
              %s597 = smul.u32 8, %s596
              %s598 = scalar_lea.vmem %s431, %s597 [#allocation3]
              %s599 = smul.u32 8, %s596
              %s600 = scalar_lea.vmem %s563, %s599
              // While loop
              $region108: #{dice_loss.1} parent=99 // loop_pre_header
                _
              $region109: #{dice_loss.1} parent=99 // loop_header
                %s602 = sphi 0, %s604
                %p603 = scmp.ge.s32.totalorder %s602, %s595
                %s607 = sphi 0, %s614
                %s608 = sphi %s598, %s617
                %s609 = sphi %s600, %s618
              $region110: #{dice_loss.1} parent=99 // loop_header_branch
                %606 = sbr.rel (%p603) target = $region114
              $region111: #{dice_loss.1} parent=99 // loop_body
                %v610 = vld [vmem:[%s608] sm:%s572]
                %611 = vst [vmem:[%s609] sm:%s572] %v610
                %s612 = sadd.s32 1, %s607
                %p613 = scmp.ge.s32.totalorder %s612, %s595
                %s614 = scalar_select %p613, 0, %s612
                %s615 = smul.u32 %s614, 8
                %s616 = smul.u32 %s614, 8
                %s617 = scalar_lea.vmem %s598, %s615 [#allocation3]
                %s618 = scalar_lea.vmem %s600, %s616
              $region112: #{dice_loss.1} parent=99 // loop_footer
                %s604 = sadd.s32 %s602, 1
              $region113: #{dice_loss.1} parent=99 // loop_footer_branch
                %601 = sbr.rel target = $region109
              $region114: #{dice_loss.1} parent=99 // loop_exit
                _
            $region100: #{dice_loss.1} parent=91 // pred_fallthru
              _
          $region92: #{dice_loss.1} parent=87 // pred_fallthru
            _
          %669 = vnop
        $region88: #{dice_loss.1} parent=27 // pred_fallthru
          _
        // Predicated region
        $region137: #{dice_loss.1} parent=27 // pred_check
          %p670 = pneg %p154
        $region138: #{dice_loss.1} parent=27 // pred_check_branch
          %672 = sbr.rel (%p670) target = $region140
        $region139: #{dice_loss.1} parent=27 // pred_region
          %s673 = smul.u32 2, %s20
          %s674 = ssub.s32 3, %s673
          %p675 = scmp.lt.s32.totalorder %s674, 2
          %s676 = scalar_select %p675, %s674, 2
          %s677 = smul.u32 8, %s676
          %p678 = scmp.ne.s32.totalorder 0, %s677
          %s679 = smul.addr %s673, 8
          %s680 = scalar_lea.vmem %s4, %s679
          // Predicated region
          $region141: #{dice_loss.1} parent=139 // pred_check
            %p681 = pneg %p678
          $region142: #{dice_loss.1} parent=139 // pred_check_branch
            %683 = sbr.rel (%p681) target = $region144
          $region143: #{dice_loss.1} parent=139 // pred_region
            // Predicated region
            $region145: #{dice_loss.1} parent=143 // pred_check
              _
            $region146: #{dice_loss.1} parent=143 // pred_check_branch
              %685 = sbr.rel (0) target = $region148
            $region147: #{dice_loss.1} parent=143 // pred_region
              // Predicated region
              $region167: #{dice_loss.1} parent=147 // pred_check
                _
              $region168: #{dice_loss.1} parent=147 // pred_check_branch
                %737 = sbr.rel (0) target = $region170
              $region169: #{dice_loss.1} parent=147 // pred_region
                %s738 = sshrl.u32 %s676, 1
                // While loop
                $region171: #{dice_loss.1} parent=169 // loop_pre_header
                  _
                $region172: #{dice_loss.1} parent=169 // loop_header
                  %s740 = sphi 0, %s742
                  %p741 = scmp.ge.s32.totalorder %s740, %s738
                  %s745 = sphi 0, %s754
                  %s746 = sphi %s435, %s757
                  %s747 = sphi %s680, %s758
                $region173: #{dice_loss.1} parent=169 // loop_header_branch
                  %744 = sbr.rel (%p741) target = $region177
                $region174: #{dice_loss.1} parent=169 // loop_body
                  %v748 = vld [vmem:[%s746] sm:$0xff]
                  %749 = vst [vmem:[%s747] sm:$0xff] %v748
                  %v750 = vld [vmem:[%s746 + $0x8] sm:$0xff]
                  %751 = vst [vmem:[%s747 + $0x8] sm:$0xff] %v750
                  %s752 = sadd.s32 1, %s745
                  %p753 = scmp.ge.s32.totalorder %s752, %s738
                  %s754 = scalar_select %p753, 0, %s752
                  %s755 = smul.u32 %s754, 16
                  %s756 = smul.u32 %s754, 16
                  %s757 = scalar_lea.vmem %s435, %s755 [#allocation4]
                  %s758 = scalar_lea.vmem %s680, %s756
                $region175: #{dice_loss.1} parent=169 // loop_footer
                  %s742 = sadd.s32 %s740, 1
                $region176: #{dice_loss.1} parent=169 // loop_footer_branch
                  %739 = sbr.rel target = $region172
                $region177: #{dice_loss.1} parent=169 // loop_exit
                  _
                %s759 = sshrl.u32 %s676, 1
                %s760 = sand.u32 %s676, 1
                %s761 = smul.u32 %s759, 2
                %s762 = smul.u32 8, %s761
                %s763 = scalar_lea.vmem %s435, %s762 [#allocation4]
                %s764 = smul.u32 8, %s761
                %s765 = scalar_lea.vmem %s680, %s764
                // While loop
                $region178: #{dice_loss.1} parent=169 // loop_pre_header
                  _
                $region179: #{dice_loss.1} parent=169 // loop_header
                  %s767 = sphi 0, %s769
                  %p768 = scmp.ge.s32.totalorder %s767, %s760
                  %s772 = sphi 0, %s779
                  %s773 = sphi %s763, %s782
                  %s774 = sphi %s765, %s783
                $region180: #{dice_loss.1} parent=169 // loop_header_branch
                  %771 = sbr.rel (%p768) target = $region184
                $region181: #{dice_loss.1} parent=169 // loop_body
                  %v775 = vld [vmem:[%s773] sm:$0xff]
                  %776 = vst [vmem:[%s774] sm:$0xff] %v775
                  %s777 = sadd.s32 1, %s772
                  %p778 = scmp.ge.s32.totalorder %s777, %s760
                  %s779 = scalar_select %p778, 0, %s777
                  %s780 = smul.u32 %s779, 8
                  %s781 = smul.u32 %s779, 8
                  %s782 = scalar_lea.vmem %s763, %s780 [#allocation4]
                  %s783 = scalar_lea.vmem %s765, %s781
                $region182: #{dice_loss.1} parent=169 // loop_footer
                  %s769 = sadd.s32 %s767, 1
                $region183: #{dice_loss.1} parent=169 // loop_footer_branch
                  %766 = sbr.rel target = $region179
                $region184: #{dice_loss.1} parent=169 // loop_exit
                  _
              $region170: #{dice_loss.1} parent=147 // pred_fallthru
                _
              // Predicated region
              $region185: #{dice_loss.1} parent=147 // pred_check
                _
              $region186: #{dice_loss.1} parent=147 // pred_check_branch
                %785 = sbr.rel target = $region188
              $region187: #{dice_loss.1} parent=147 // pred_region
                _
              $region188: #{dice_loss.1} parent=147 // pred_fallthru
                _
            $region148: #{dice_loss.1} parent=143 // pred_fallthru
              _
            // Predicated region
            $region149: #{dice_loss.1} parent=143 // pred_check
              _
            $region150: #{dice_loss.1} parent=143 // pred_check_branch
              %687 = sbr.rel target = $region152
            $region151: #{dice_loss.1} parent=143 // pred_region
              %s689 = ssub.s32 256, 1
              %s690 = sshrl.u32 %s676, 1
              // While loop
              $region153: #{dice_loss.1} parent=151 // loop_pre_header
                _
              $region154: #{dice_loss.1} parent=151 // loop_header
                %s692 = sphi 0, %s694
                %p693 = scmp.ge.s32.totalorder %s692, %s690
                %s697 = sphi 0, %s706
                %s698 = sphi %s435, %s709
                %s699 = sphi %s680, %s710
              $region155: #{dice_loss.1} parent=151 // loop_header_branch
                %696 = sbr.rel (%p693) target = $region159
              $region156: #{dice_loss.1} parent=151 // loop_body
                %v700 = vld [vmem:[%s698] sm:%s689]
                %701 = vst [vmem:[%s699] sm:%s689] %v700
                %v702 = vld [vmem:[%s698 + $0x8] sm:%s689]
                %703 = vst [vmem:[%s699 + $0x8] sm:%s689] %v702
                %s704 = sadd.s32 1, %s697
                %p705 = scmp.ge.s32.totalorder %s704, %s690
                %s706 = scalar_select %p705, 0, %s704
                %s707 = smul.u32 %s706, 16
                %s708 = smul.u32 %s706, 16
                %s709 = scalar_lea.vmem %s435, %s707 [#allocation4]
                %s710 = scalar_lea.vmem %s680, %s708
              $region157: #{dice_loss.1} parent=151 // loop_footer
                %s694 = sadd.s32 %s692, 1
              $region158: #{dice_loss.1} parent=151 // loop_footer_branch
                %691 = sbr.rel target = $region154
              $region159: #{dice_loss.1} parent=151 // loop_exit
                _
              %s711 = sshrl.u32 %s676, 1
              %s712 = sand.u32 %s676, 1
              %s713 = smul.u32 %s711, 2
              %s714 = smul.u32 8, %s713
              %s715 = scalar_lea.vmem %s435, %s714 [#allocation4]
              %s716 = smul.u32 8, %s713
              %s717 = scalar_lea.vmem %s680, %s716
              // While loop
              $region160: #{dice_loss.1} parent=151 // loop_pre_header
                _
              $region161: #{dice_loss.1} parent=151 // loop_header
                %s719 = sphi 0, %s721
                %p720 = scmp.ge.s32.totalorder %s719, %s712
                %s724 = sphi 0, %s731
                %s725 = sphi %s715, %s734
                %s726 = sphi %s717, %s735
              $region162: #{dice_loss.1} parent=151 // loop_header_branch
                %723 = sbr.rel (%p720) target = $region166
              $region163: #{dice_loss.1} parent=151 // loop_body
                %v727 = vld [vmem:[%s725] sm:%s689]
                %728 = vst [vmem:[%s726] sm:%s689] %v727
                %s729 = sadd.s32 1, %s724
                %p730 = scmp.ge.s32.totalorder %s729, %s712
                %s731 = scalar_select %p730, 0, %s729
                %s732 = smul.u32 %s731, 8
                %s733 = smul.u32 %s731, 8
                %s734 = scalar_lea.vmem %s715, %s732 [#allocation4]
                %s735 = scalar_lea.vmem %s717, %s733
              $region164: #{dice_loss.1} parent=151 // loop_footer
                %s721 = sadd.s32 %s719, 1
              $region165: #{dice_loss.1} parent=151 // loop_footer_branch
                %718 = sbr.rel target = $region161
              $region166: #{dice_loss.1} parent=151 // loop_exit
                _
            $region152: #{dice_loss.1} parent=143 // pred_fallthru
              _
          $region144: #{dice_loss.1} parent=139 // pred_fallthru
            _
          %786 = vnop
        $region140: #{dice_loss.1} parent=27 // pred_fallthru
          _
      $region28: #{dice_loss.1} parent=5 // pred_fallthru
        _
      %p787 = scmp.le.s32.totalorder 2, %s11
      // Predicated region
      $region189: #{dice_loss.1} parent=5 // pred_check
        %p788 = pneg %p787
      $region190: #{dice_loss.1} parent=5 // pred_check_branch
        %790 = sbr.rel (%p788) target = $region192
      $region191: #{dice_loss.1} parent=5 // pred_region
        %s791 = ssub.s32 %s11, 2
        // Predicated region
        $region193: #{dice_loss.1} parent=191 // pred_check
          %p792 = pneg %p108
        $region194: #{dice_loss.1} parent=191 // pred_check_branch
          %794 = sbr.rel (%p792) target = $region196
        $region195: #{dice_loss.1} parent=191 // pred_region
          %s795 = sand.u32 %s93, 1
          %s796 = sand.u32 %s93, 1
          %s797 = smul.addr %s796, 16
          %s798 = scalar_lea.vmem [#allocation2], %s797
        $region196: #{dice_loss.1} parent=191 // pred_fallthru
          _
        // Predicated region
        $region197: #{dice_loss.1} parent=191 // pred_check
          %p799 = pneg %p134
        $region198: #{dice_loss.1} parent=191 // pred_check_branch
          %801 = sbr.rel (%p799) target = $region200
        $region199: #{dice_loss.1} parent=191 // pred_region
          %s802 = sand.u32 %s119, 1
          %s803 = sand.u32 %s119, 1
          %s804 = smul.addr %s803, 16
          %s805 = scalar_lea.vmem [#allocation3], %s804
        $region200: #{dice_loss.1} parent=191 // pred_fallthru
          _
        // Predicated region
        $region201: #{dice_loss.1} parent=191 // pred_check
          %p806 = pneg %p160
        $region202: #{dice_loss.1} parent=191 // pred_check_branch
          %808 = sbr.rel (%p806) target = $region204
        $region203: #{dice_loss.1} parent=191 // pred_region
          %s809 = sand.u32 %s145, 1
          %s810 = sand.u32 %s145, 1
          %s811 = smul.addr %s810, 16
          %s812 = scalar_lea.vmem [#allocation4], %s811
        $region204: #{dice_loss.1} parent=191 // pred_fallthru
          _
      $region192: #{dice_loss.1} parent=5 // pred_fallthru
        _
    $region6: #{dice_loss.1} parent=1 // loop_footer
      %s15 = sadd.s32 1, %s11
    $region7: #{dice_loss.1} parent=1 // loop_footer_branch
      %10 = sbr.rel target = $region3
    $region8: #{dice_loss.1} parent=1 // loop_exit
      _

</llo_original>
